<compile_context>
chip_gen: v7x
topology: tpu7x:2x2x1
jax: 0.10.0
libtpu: 0.0.40
codegen_flags: <defaults>
</compile_context>

<pallas_src>
import jax
import jax.numpy as jnp
from jax.experimental import pallas as pl
from jax.experimental.pallas import tpu as pltpu


def _round_up(v, m):
    return (v + m - 1) // m * m


def block_kernel(x_ref, adj_ref, mask_ref,
                 w1_ref, b1_ref, w2_ref, b2_ref,
                 wlt_ref, wlb_ref, blin_ref,
                 out_ref):
    bb, n, cin = x_ref.shape

    adj = adj_ref[...]                      # [Bb, N, N]
    mask_flat = mask_ref[...].reshape(bb * n, 1)
    x_flat = x_ref[...].reshape(bb * n, cin)

    # --- DenseGCNConv normalization (self-loops + symmetric degree norm) ---
    # Single bool diagonal mask, reused for the whole batch block.
    diag = (jax.lax.broadcasted_iota(jnp.int32, (n, n), 0)
            == jax.lax.broadcasted_iota(jnp.int32, (n, n), 1))
    adj_sl = jnp.where(diag[None], jnp.float32(1.0), adj)      # [Bb, N, N]
    deg = jnp.sum(adj_sl, axis=-1, keepdims=True)               # [Bb, N, 1]
    dis = jax.lax.rsqrt(jnp.maximum(deg, 1.0))                  # clamp(min=1)^-0.5

    def propagate(hw_flat):
        # d * (A_sl @ (d * hw))  -- normalization folded into the thin operand,
        # adj_norm itself is never built.
        h = hw_flat.reshape(bb, n, hw_flat.shape[-1])
        out = jnp.einsum('bij,bjh->bih', adj_sl, dis * h,
                         preferred_element_type=jnp.float32)
        out = dis * out
        return out.reshape(bb * n, out.shape[-1])

    def gcn(h_flat, w, b):
        hw = jnp.dot(h_flat, w, preferred_element_type=jnp.float32)  # [(Bb*N), C]
        out = propagate(hw) + b                                       # bias
        out = out * mask_flat                                         # mask inside conv
        return jnp.maximum(out, 0.0)                                  # relu (Block)

    h1 = gcn(x_flat, w1_ref[...], b1_ref[...])
    h2 = gcn(h1, w2_ref[...], b2_ref[...])

    # JumpingKnowledge('cat') + Linear: concat([h1,h2]) @ Wlin == h1@Wt + h2@Wb.
    y = (jnp.dot(h1, wlt_ref[...], preferred_element_type=jnp.float32)
         + jnp.dot(h2, wlb_ref[...], preferred_element_type=jnp.float32)
         + blin_ref[...])
    y = jnp.maximum(y, 0.0) * mask_flat
    out_ref[...] = y.reshape(bb, n, y.shape[-1])


def block_forward(x, adj, mask, params, *, batch_block=None):
    """x: [B,N,Cin] f32, adj: [B,N,N] f32, mask: [B,N,1] f32."""
    w1, b1, w2, b2, wlin, blin = params
    B, N, Cin = x.shape
    H = w1.shape[1]
    Cout = wlin.shape[1]
    Cout_pad = _round_up(Cout, 128)          # lane-dense output slab

    # Pre-split the 'cat' linear weight and zero-pad the output channel dim.
    pad = Cout_pad - Cout
    wlt = jnp.pad(wlin[:H], ((0, 0), (0, pad)))
    wlb = jnp.pad(wlin[H:], ((0, 0), (0, pad)))
    blin_p = jnp.pad(blin, ((0, 0), (0, pad)))

    # Graphs per grid step: fuse batch elements to amortize per-step overhead
    # but keep >= 2 grid steps when possible (v7x has 2 TensorCores).
    if batch_block is None:
        batch_block = max(1, B // 2)
    while B % batch_block:
        batch_block -= 1
    Bb = batch_block
    grid = (B // Bb,)

    # VMEM budget from the actual tiles (double-buffered I/O + resident weights),
    # with headroom; capped so it also fits v7x's 64 MiB physical VMEM.
    io_bytes = 2 * 4 * Bb * (N * Cin + N * N + N + N * Cout_pad)
    w_bytes = 2 * 4 * (Cin * H + H + H * H + H + 2 * H * Cout_pad + Cout_pad)
    vmem_limit = int(min(max(4 * (io_bytes + w_bytes), 32 << 20), 48 << 20))
    # TODO(synk): for very large N, additionally row-tile adj ((Bb, TN, N) blocks)
    # so a full-adjacency tile is not required to fit VMEM on v7x.

    grid_spec = pltpu.PrefetchScalarGridSpec(
        num_scalar_prefetch=0,
        grid=grid,
        in_specs=[
            pl.BlockSpec((Bb, N, Cin), lambda b: (b, 0, 0)),
            pl.BlockSpec((Bb, N, N), lambda b: (b, 0, 0)),
            pl.BlockSpec((Bb, N, 1), lambda b: (b, 0, 0)),
            pl.BlockSpec((Cin, H), lambda b: (0, 0)),
            pl.BlockSpec((1, H), lambda b: (0, 0)),
            pl.BlockSpec((H, H), lambda b: (0, 0)),
            pl.BlockSpec((1, H), lambda b: (0, 0)),
            pl.BlockSpec((H, Cout_pad), lambda b: (0, 0)),
            pl.BlockSpec((H, Cout_pad), lambda b: (0, 0)),
            pl.BlockSpec((1, Cout_pad), lambda b: (0, 0)),
        ],
        out_specs=pl.BlockSpec((Bb, N, Cout_pad), lambda b: (b, 0, 0)),
    )

    out_padded = pl.pallas_call(
        block_kernel,
        out_shape=jax.ShapeDtypeStruct((B, N, Cout_pad), jnp.float32),
        grid_spec=grid_spec,
        compiler_params=pltpu.CompilerParams(
            dimension_semantics=("parallel",),
            vmem_limit_bytes=vmem_limit),
    )(x, adj, mask, w1, b1, w2, b2, wlt, wlb, blin_p)

    return out_padded[..., :Cout]


def block_forward_ref(x, adj, mask, params):
    """Pure-JAX reference for correctness checking."""
    w1, b1, w2, b2, wlin, blin = params
    N = adj.shape[1]
    eye = jnp.eye(N, dtype=jnp.bool_)
    adj_sl = jnp.where(eye[None], 1.0, adj)
    deg = adj_sl.sum(-1, keepdims=True)
    dis = jnp.maximum(deg, 1.0) ** -0.5
    adj_norm = dis * adj_sl * jnp.swapaxes(dis, -1, -2)

    def gcn(h, w, b):
        out = adj_norm @ (h @ w) + b
        out = out * mask
        return jax.nn.relu(out)

    h1 = gcn(x, w1, b1)
    h2 = gcn(h1, w2, b2)
    y = jax.nn.relu(jnp.concatenate([h1, h2], axis=-1) @ wlin + blin)
    return y * mask


if __name__ == "__main__":
    # Small shapes consistent with the module: B=2 graphs, N=16 nodes,
    # in_channels=4, hidden_channels=8, out_channels=6, num_layers=2, mode='cat'.
    B, N, Cin, H, Cout = 2, 16, 4, 8, 6

    key = jax.random.PRNGKey(0)
    kx, ka, km, k1, k2, k3, k4, k5, k6 = jax.random.split(key, 9)

    x = jax.random.normal(kx, (B, N, Cin), dtype=jnp.float32)

    # Deterministic symmetric binary adjacency.
    a = (jax.random.uniform(ka, (B, N, N)) > 0.7).astype(jnp.float32)
    adj = jnp.maximum(a, jnp.swapaxes(a, -1, -2))

    # Node mask: batch 0 fully valid, batch 1 has the last 5 nodes masked out.
    node_valid = jnp.arange(N)[None, :] < jnp.array([[N], [N - 5]])
    mask = node_valid.astype(jnp.float32)[..., None]  # [B, N, 1]

    # Deterministic parameters (synthetic init; shapes from Block.__init__).
    scale = 0.1
    w1 = scale * jax.random.normal(k1, (Cin, H), dtype=jnp.float32)
    b1 = scale * jax.random.normal(k2, (1, H), dtype=jnp.float32)
    w2 = scale * jax.random.normal(k3, (H, H), dtype=jnp.float32)
    b2 = scale * jax.random.normal(k4, (1, H), dtype=jnp.float32)
    wlin = scale * jax.random.normal(k5, (2 * H, Cout), dtype=jnp.float32)
    blin = scale * jax.random.normal(k6, (1, Cout), dtype=jnp.float32)
    params = (w1, b1, w2, b2, wlin, blin)

    out = block_forward(x, adj, mask, params)
    out = jax.block_until_ready(out)

    ref = block_forward_ref(x, adj, mask, params)
    assert out.shape == (B, N, Cout)
    assert jnp.allclose(out, ref, atol=1e-5, rtol=1e-5), "mismatch vs JAX reference"

    print("KERNEL_OK")
</pallas_src>

<mosaic_0001>
module attributes {stable_mosaic.version = 11 : i64} {
  func.func @block_kernel(%arg0: i32, %arg1: memref<1x16x4xf32, #tpu.memory_space<vmem>>, %arg2: memref<1x16x16xf32, #tpu.memory_space<vmem>>, %arg3: memref<1x16x1xf32, #tpu.memory_space<vmem>>, %arg4: memref<4x8xf32, #tpu.memory_space<vmem>>, %arg5: memref<1x8xf32, #tpu.memory_space<vmem>>, %arg6: memref<8x8xf32, #tpu.memory_space<vmem>>, %arg7: memref<1x8xf32, #tpu.memory_space<vmem>>, %arg8: memref<8x128xf32, #tpu.memory_space<vmem>>, %arg9: memref<8x128xf32, #tpu.memory_space<vmem>>, %arg10: memref<1x128xf32, #tpu.memory_space<vmem>>, %arg11: memref<1x16x128xf32, #tpu.memory_space<vmem>>) attributes {dimension_semantics = [#tpu.dimension_semantics<parallel>], iteration_bounds = array<i64: 2>, scalar_prefetch = 0 : i64, scratch_operands = 0 : i64, tpu.core_type = #tpu.core_type<tc>, window_params = [{transform_indices = @transform_0, window_bounds = array<i64: 1, 16, 4>}, {transform_indices = @transform_1, window_bounds = array<i64: 1, 16, 16>}, {transform_indices = @transform_2, window_bounds = array<i64: 1, 16, 1>}, {pipeline_mode = #tpu.pipeline_mode<synchronous>, transform_indices = @transform_3, window_bounds = array<i64: 4, 8>}, {pipeline_mode = #tpu.pipeline_mode<synchronous>, transform_indices = @transform_4, window_bounds = array<i64: 1, 8>}, {pipeline_mode = #tpu.pipeline_mode<synchronous>, transform_indices = @transform_5, window_bounds = array<i64: 8, 8>}, {pipeline_mode = #tpu.pipeline_mode<synchronous>, transform_indices = @transform_6, window_bounds = array<i64: 1, 8>}, {pipeline_mode = #tpu.pipeline_mode<synchronous>, transform_indices = @transform_7, window_bounds = array<i64: 8, 128>}, {pipeline_mode = #tpu.pipeline_mode<synchronous>, transform_indices = @transform_8, window_bounds = array<i64: 8, 128>}, {pipeline_mode = #tpu.pipeline_mode<synchronous>, transform_indices = @transform_9, window_bounds = array<i64: 1, 128>}, {transform_indices = @transform_10, window_bounds = array<i64: 1, 16, 128>}]} {
    %c0 = arith.constant 0 : index
    %c0_0 = arith.constant 0 : index
    %c0_1 = arith.constant 0 : index
    %0 = vector.load %arg2[%c0, %c0_0, %c0_1] : memref<1x16x16xf32, #tpu.memory_space<vmem>>, vector<1x16x16xf32>
    %c0_2 = arith.constant 0 : index
    %c0_3 = arith.constant 0 : index
    %c0_4 = arith.constant 0 : index
    %1 = vector.load %arg3[%c0_2, %c0_3, %c0_4] : memref<1x16x1xf32, #tpu.memory_space<vmem>>, vector<1x16x1xf32>
    %2 = vector.shape_cast %1 : vector<1x16x1xf32> to vector<16x1xf32>
    %c0_5 = arith.constant 0 : index
    %c0_6 = arith.constant 0 : index
    %c0_7 = arith.constant 0 : index
    %3 = vector.load %arg1[%c0_5, %c0_6, %c0_7] : memref<1x16x4xf32, #tpu.memory_space<vmem>>, vector<1x16x4xf32>
    %4 = vector.shape_cast %3 : vector<1x16x4xf32> to vector<16x4xf32>
    %5 = tpu.iota {dimensions = array<i32: 0>} : vector<16x16xi32>
    %6 = tpu.iota {dimensions = array<i32: 1>} : vector<16x16xi32>
    %7 = arith.cmpi eq, %5, %6 : vector<16x16xi32>
    %8 = vector.shape_cast %7 : vector<16x16xi1> to vector<1x16x16xi1>
    %cst = arith.constant 1.000000e+00 : f32
    %9 = vector.broadcast %cst : f32 to vector<1x16x16xf32>
    %10 = arith.select %8, %9, %0 : vector<1x16x16xi1>, vector<1x16x16xf32>
    %cst_8 = arith.constant dense<0.000000e+00> : vector<1x16xf32>
    %11 = vector.multi_reduction <add>, %10, %cst_8 [2] : vector<1x16x16xf32> to vector<1x16xf32>
    %12 = vector.shape_cast %11 : vector<1x16xf32> to vector<1x16x1xf32>
    %cst_9 = arith.constant 1.000000e+00 : f32
    %13 = vector.broadcast %cst_9 : f32 to vector<1x16x1xf32>
    %14 = arith.maximumf %12, %13 : vector<1x16x1xf32>
    %15 = math.rsqrt %14 : vector<1x16x1xf32>
    %c0_10 = arith.constant 0 : index
    %c0_11 = arith.constant 0 : index
    %16 = vector.load %arg4[%c0_10, %c0_11] : memref<4x8xf32, #tpu.memory_space<vmem>>, vector<4x8xf32>
    %c0_12 = arith.constant 0 : index
    %c0_13 = arith.constant 0 : index
    %17 = vector.load %arg5[%c0_12, %c0_13] : memref<1x8xf32, #tpu.memory_space<vmem>>, vector<1x8xf32>
    %cst_14 = arith.constant dense<0.000000e+00> : vector<16x8xf32>
    %18 = tpu.matmul %4, %16, %cst_14 {dimension_numbers = #tpu.dot_dimension_numbers<[1], [0], [0], [1], [0, 0, 1, 1], [], []>} : vector<16x4xf32>, vector<4x8xf32>, vector<16x8xf32> -> vector<16x8xf32>
    %19 = vector.shape_cast %18 : vector<16x8xf32> to vector<1x16x8xf32>
    %20 = vector.broadcast %15 : vector<1x16x1xf32> to vector<1x16x8xf32>
    %21 = arith.mulf %20, %19 : vector<1x16x8xf32>
    "tpu.trace_start"() <{level = 10 : i32, message = "bij,bjh->bih"}> : () -> ()
    %cst_15 = arith.constant dense<0.000000e+00> : vector<1x16x8xf32>
    %22 = tpu.matmul %10, %21, %cst_15 {dimension_numbers = #tpu.dot_dimension_numbers<[2], [1], [1], [2], [0, 0, 0, 1, 1, 2], [0], [0]>} : vector<1x16x16xf32>, vector<1x16x8xf32>, vector<1x16x8xf32> -> vector<1x16x8xf32>
    "tpu.trace_stop"() : () -> ()
    %23 = vector.broadcast %15 : vector<1x16x1xf32> to vector<1x16x8xf32>
    %24 = arith.mulf %23, %22 : vector<1x16x8xf32>
    %25 = vector.shape_cast %24 : vector<1x16x8xf32> to vector<16x8xf32>
    %26 = vector.broadcast %17 : vector<1x8xf32> to vector<16x8xf32>
    %27 = arith.addf %25, %26 : vector<16x8xf32>
    %28 = vector.broadcast %2 : vector<16x1xf32> to vector<16x8xf32>
    %29 = arith.mulf %27, %28 : vector<16x8xf32>
    %cst_16 = arith.constant 0.000000e+00 : f32
    %30 = vector.broadcast %cst_16 : f32 to vector<16x8xf32>
    %31 = arith.maximumf %29, %30 : vector<16x8xf32>
    %c0_17 = arith.constant 0 : index
    %c0_18 = arith.constant 0 : index
    %32 = vector.load %arg6[%c0_17, %c0_18] : memref<8x8xf32, #tpu.memory_space<vmem>>, vector<8x8xf32>
    %c0_19 = arith.constant 0 : index
    %c0_20 = arith.constant 0 : index
    %33 = vector.load %arg7[%c0_19, %c0_20] : memref<1x8xf32, #tpu.memory_space<vmem>>, vector<1x8xf32>
    %cst_21 = arith.constant dense<0.000000e+00> : vector<16x8xf32>
    %34 = tpu.matmul %31, %32, %cst_21 {dimension_numbers = #tpu.dot_dimension_numbers<[1], [0], [0], [1], [0, 0, 1, 1], [], []>} : vector<16x8xf32>, vector<8x8xf32>, vector<16x8xf32> -> vector<16x8xf32>
    %35 = vector.shape_cast %34 : vector<16x8xf32> to vector<1x16x8xf32>
    %36 = vector.broadcast %15 : vector<1x16x1xf32> to vector<1x16x8xf32>
    %37 = arith.mulf %36, %35 : vector<1x16x8xf32>
    "tpu.trace_start"() <{level = 10 : i32, message = "bij,bjh->bih"}> : () -> ()
    %cst_22 = arith.constant dense<0.000000e+00> : vector<1x16x8xf32>
    %38 = tpu.matmul %10, %37, %cst_22 {dimension_numbers = #tpu.dot_dimension_numbers<[2], [1], [1], [2], [0, 0, 0, 1, 1, 2], [0], [0]>} : vector<1x16x16xf32>, vector<1x16x8xf32>, vector<1x16x8xf32> -> vector<1x16x8xf32>
    "tpu.trace_stop"() : () -> ()
    %39 = vector.broadcast %15 : vector<1x16x1xf32> to vector<1x16x8xf32>
    %40 = arith.mulf %39, %38 : vector<1x16x8xf32>
    %41 = vector.shape_cast %40 : vector<1x16x8xf32> to vector<16x8xf32>
    %42 = vector.broadcast %33 : vector<1x8xf32> to vector<16x8xf32>
    %43 = arith.addf %41, %42 : vector<16x8xf32>
    %44 = vector.broadcast %2 : vector<16x1xf32> to vector<16x8xf32>
    %45 = arith.mulf %43, %44 : vector<16x8xf32>
    %cst_23 = arith.constant 0.000000e+00 : f32
    %46 = vector.broadcast %cst_23 : f32 to vector<16x8xf32>
    %47 = arith.maximumf %45, %46 : vector<16x8xf32>
    %c0_24 = arith.constant 0 : index
    %c0_25 = arith.constant 0 : index
    %48 = vector.load %arg8[%c0_24, %c0_25] : memref<8x128xf32, #tpu.memory_space<vmem>>, vector<8x128xf32>
    %cst_26 = arith.constant dense<0.000000e+00> : vector<16x128xf32>
    %49 = tpu.matmul %31, %48, %cst_26 {dimension_numbers = #tpu.dot_dimension_numbers<[1], [0], [0], [1], [0, 0, 1, 1], [], []>} : vector<16x8xf32>, vector<8x128xf32>, vector<16x128xf32> -> vector<16x128xf32>
    %c0_27 = arith.constant 0 : index
    %c0_28 = arith.constant 0 : index
    %50 = vector.load %arg9[%c0_27, %c0_28] : memref<8x128xf32, #tpu.memory_space<vmem>>, vector<8x128xf32>
    %cst_29 = arith.constant dense<0.000000e+00> : vector<16x128xf32>
    %51 = tpu.matmul %47, %50, %cst_29 {dimension_numbers = #tpu.dot_dimension_numbers<[1], [0], [0], [1], [0, 0, 1, 1], [], []>} : vector<16x8xf32>, vector<8x128xf32>, vector<16x128xf32> -> vector<16x128xf32>
    %52 = arith.addf %49, %51 : vector<16x128xf32>
    %c0_30 = arith.constant 0 : index
    %c0_31 = arith.constant 0 : index
    %53 = vector.load %arg10[%c0_30, %c0_31] : memref<1x128xf32, #tpu.memory_space<vmem>>, vector<1x128xf32>
    %54 = vector.broadcast %53 : vector<1x128xf32> to vector<16x128xf32>
    %55 = arith.addf %52, %54 : vector<16x128xf32>
    %cst_32 = arith.constant 0.000000e+00 : f32
    %56 = vector.broadcast %cst_32 : f32 to vector<16x128xf32>
    %57 = arith.maximumf %55, %56 : vector<16x128xf32>
    %58 = vector.broadcast %2 : vector<16x1xf32> to vector<16x128xf32>
    %59 = arith.mulf %57, %58 : vector<16x128xf32>
    %60 = vector.shape_cast %59 : vector<16x128xf32> to vector<1x16x128xf32>
    %c0_33 = arith.constant 0 : index
    %c0_34 = arith.constant 0 : index
    %c0_35 = arith.constant 0 : index
    %61 = vector.load %arg11[%c0_33, %c0_34, %c0_35] : memref<1x16x128xf32, #tpu.memory_space<vmem>>, vector<1x16x128xf32>
    tpu.vector_store %arg11[%c0_33, %c0_34, %c0_35], %60 {strides = array<i32>} : memref<1x16x128xf32, #tpu.memory_space<vmem>>, vector<1x16x128xf32>,
    return
  }
  func.func @transform_0(%arg0: i32) -> (i32, i32, i32) {
    %c0_i32 = arith.constant 0 : i32
    %c0_i32_0 = arith.constant 0 : i32
    %c0_i32_1 = arith.constant 0 : i32
    return %arg0, %c0_i32, %c0_i32_0 : i32, i32, i32
  }
  func.func @transform_1(%arg0: i32) -> (i32, i32, i32) {
    %c0_i32 = arith.constant 0 : i32
    %c0_i32_0 = arith.constant 0 : i32
    %c0_i32_1 = arith.constant 0 : i32
    return %arg0, %c0_i32, %c0_i32_0 : i32, i32, i32
  }
  func.func @transform_2(%arg0: i32) -> (i32, i32, i32) {
    %c0_i32 = arith.constant 0 : i32
    %c0_i32_0 = arith.constant 0 : i32
    %c0_i32_1 = arith.constant 0 : i32
    return %arg0, %c0_i32, %c0_i32_0 : i32, i32, i32
  }
  func.func @transform_3(%arg0: i32) -> (i32, i32) {
    %c0_i32 = arith.constant 0 : i32
    %c0_i32_0 = arith.constant 0 : i32
    %c0_i32_1 = arith.constant 0 : i32
    return %c0_i32, %c0_i32_0 : i32, i32
  }
  func.func @transform_4(%arg0: i32) -> (i32, i32) {
    %c0_i32 = arith.constant 0 : i32
    %c0_i32_0 = arith.constant 0 : i32
    %c0_i32_1 = arith.constant 0 : i32
    return %c0_i32, %c0_i32_0 : i32, i32
  }
  func.func @transform_5(%arg0: i32) -> (i32, i32) {
    %c0_i32 = arith.constant 0 : i32
    %c0_i32_0 = arith.constant 0 : i32
    %c0_i32_1 = arith.constant 0 : i32
    return %c0_i32, %c0_i32_0 : i32, i32
  }
  func.func @transform_6(%arg0: i32) -> (i32, i32) {
    %c0_i32 = arith.constant 0 : i32
    %c0_i32_0 = arith.constant 0 : i32
    %c0_i32_1 = arith.constant 0 : i32
    return %c0_i32, %c0_i32_0 : i32, i32
  }
  func.func @transform_7(%arg0: i32) -> (i32, i32) {
    %c0_i32 = arith.constant 0 : i32
    %c0_i32_0 = arith.constant 0 : i32
    %c0_i32_1 = arith.constant 0 : i32
    return %c0_i32, %c0_i32_0 : i32, i32
  }
  func.func @transform_8(%arg0: i32) -> (i32, i32) {
    %c0_i32 = arith.constant 0 : i32
    %c0_i32_0 = arith.constant 0 : i32
    %c0_i32_1 = arith.constant 0 : i32
    return %c0_i32, %c0_i32_0 : i32, i32
  }
  func.func @transform_9(%arg0: i32) -> (i32, i32) {
    %c0_i32 = arith.constant 0 : i32
    %c0_i32_0 = arith.constant 0 : i32
    %c0_i32_1 = arith.constant 0 : i32
    return %c0_i32, %c0_i32_0 : i32, i32
  }
  func.func @transform_10(%arg0: i32) -> (i32, i32, i32) {
    %c0_i32 = arith.constant 0 : i32
    %c0_i32_0 = arith.constant 0 : i32
    %c0_i32_1 = arith.constant 0 : i32
    return %arg0, %c0_i32, %c0_i32_0 : i32, i32, i32
  }
}

</mosaic_0001>

<llo_original>
// kernel: tpu_custom_call.1
$region0: #{tpu_custom_call.1}
  #allocation0 [shape = 'u32[]', space=smem, size = 0x4, offset = 0x4, fixed_abs, tag = 'smem constant byte address 0x4 - core index']
  #allocation1 [shape = 'u32[144,128]{1,0:T(1,128)}', space=vmem, size = 0x12000, scoped, tag = 'internal scratch']
  %s0 = inlined_call_operand.vmem [shape: f32[2,16,4], index: 0, kind: input, shape index: {}]
  %s1 = inlined_call_operand.vmem [shape: f32[2,16,16], index: 1, kind: input, shape index: {}]
  %s2 = inlined_call_operand.vmem [shape: f32[2,16,1], index: 2, kind: input, shape index: {}]
  %s3 = inlined_call_operand.vmem [shape: f32[4,8], index: 3, kind: input, shape index: {}]
  %s4 = inlined_call_operand.vmem [shape: f32[1,8], index: 4, kind: input, shape index: {}]
  %s5 = inlined_call_operand.vmem [shape: f32[8,8], index: 5, kind: input, shape index: {}]
  %s6 = inlined_call_operand.vmem [shape: f32[1,8], index: 6, kind: input, shape index: {}]
  %s7 = inlined_call_operand.vmem [shape: f32[8,128], index: 7, kind: input, shape index: {}]
  %s8 = inlined_call_operand.vmem [shape: f32[8,128], index: 8, kind: input, shape index: {}]
  %s9 = inlined_call_operand.vmem [shape: f32[1,128], index: 9, kind: input, shape index: {}]
  %s10 = inlined_call_operand.hbm [shape: f32[2,16,128], index: 10, kind: output, shape index: {}]
  %s11 = sld [smem:[#allocation0]]
  $region73: #{tpu_custom_call.1} parent=0
    _
  %s13 = ssub.s32 1, %s11
  %s14 = scalar_select 0, %s13, %s11
  $region1: #{tpu_custom_call.1} parent=0
    #allocation2 [shape = 'u8[16384]{0}', space=vmem, size = 0x4000, scoped, tag = 'output window, operand 0']
    #allocation3 [shape = 's32[2]{0}', space=sflag, size = 0x8, scoped, tag = 'scoped memory for tpu_custom_call.1']
    %15 = vsyncpa [#allocation3], 0
    %s16 = scalar_lea.sflag [#allocation3], 1
    %17 = vsyncpa %s16, 0
    loop: start=0, step=1, limit=4
    $region2: #{tpu_custom_call.1} parent=1 // loop_pre_header
      _
    $region3: #{tpu_custom_call.1} parent=1 // loop_header
      %s19 = sphi 0, %s23
      %p20 = scmp.ge.s32.totalorder %s19, 4
      %s29 = sphi 0, %s31
      %s32 = sphi 0, %s29
      %s33 = sphi 0, %s32
      %s49 = sphi 0, %s33
      %s55 = sphi 0, %s57
      %s58 = sphi 0, %s55
      %s59 = sphi 0, %s58
      %s75 = sphi 0, %s59
      %s81 = sphi 0, %s83
      %s84 = sphi 0, %s81
      %s85 = sphi 0, %s84
      %s101 = sphi 0, %s85
      %s105 = sphi 0, %s105
      %s107 = sphi 0, %s105
      %s108 = sphi 0, %s107
      %s122 = sphi 0, %s108
      %s126 = sphi 0, %s126
      %s128 = sphi 0, %s126
      %s129 = sphi 0, %s128
      %s143 = sphi 0, %s129
      %s147 = sphi 0, %s147
      %s149 = sphi 0, %s147
      %s150 = sphi 0, %s149
      %s164 = sphi 0, %s150
      %s168 = sphi 0, %s168
      %s170 = sphi 0, %s168
      %s171 = sphi 0, %s170
      %s185 = sphi 0, %s171
      %s189 = sphi 0, %s189
      %s191 = sphi 0, %s189
      %s192 = sphi 0, %s191
      %s206 = sphi 0, %s192
      %s210 = sphi 0, %s210
      %s212 = sphi 0, %s210
      %s213 = sphi 0, %s212
      %s227 = sphi 0, %s213
      %s231 = sphi 0, %s231
      %s233 = sphi 0, %s231
      %s234 = sphi 0, %s233
      %s248 = sphi 0, %s234
      %s254 = sphi 0, %s256
      %s257 = sphi 0, %s254
      %s258 = sphi 0, %s257
      %s274 = sphi 0, %s258
    $region4: #{tpu_custom_call.1} parent=1 // loop_header_branch
      %22 = sbr.rel (%p20) target = $region8
    $region5: #{tpu_custom_call.1} parent=1 // loop_body
      %s24 = ssub.s32 %s19, 1
      %s25 = ssub.s32 %s19, 2
      %s26 = sadd.s32 %s19, 1
      %s27 = ssub.s32 %s19, %s26
      %p28 = scmp.eq.s32.totalorder %s27, 0
      %s30 = sadd.s32 %s29, 1
      %s31 = scalar_select %p28, %s29, %s30
      %p34 = pneg %p28
      %p35 = scmp.eq.s32.totalorder %s19, 1
      %p36 = por %p34, %p35
      %p37 = scmp.ne.s32.totalorder %s29, %s32
      %p38 = scmp.eq.s32.totalorder %s19, 0
      %p39 = por %p37, %p38
      %p40 = scmp.ne.s32.totalorder %s29, %s32
      %p41 = scmp.eq.s32.totalorder %s24, 1
      %p42 = por %p40, %p41
      %p43 = scmp.ne.s32.totalorder %s32, %s33
      %p44 = scmp.eq.s32.totalorder %s24, 0
      %p45 = por %p43, %p44
      %p46 = scmp.ne.s32.totalorder %s32, %s33
      %p47 = scmp.eq.s32.totalorder %s25, 1
      %p48 = por %p46, %p47
      %p50 = scmp.ne.s32.totalorder %s33, %s49
      %p51 = scmp.eq.s32.totalorder %s25, 0
      %p52 = por %p50, %p51
      %s53 = ssub.s32 %s19, %s26
      %p54 = scmp.eq.s32.totalorder %s53, 0
      %s56 = sadd.s32 %s55, 1
      %s57 = scalar_select %p54, %s55, %s56
      %p60 = pneg %p54
      %p61 = scmp.eq.s32.totalorder %s19, 1
      %p62 = por %p60, %p61
      %p63 = scmp.ne.s32.totalorder %s55, %s58
      %p64 = scmp.eq.s32.totalorder %s19, 0
      %p65 = por %p63, %p64
      %p66 = scmp.ne.s32.totalorder %s55, %s58
      %p67 = scmp.eq.s32.totalorder %s24, 1
      %p68 = por %p66, %p67
      %p69 = scmp.ne.s32.totalorder %s58, %s59
      %p70 = scmp.eq.s32.totalorder %s24, 0
      %p71 = por %p69, %p70
      %p72 = scmp.ne.s32.totalorder %s58, %s59
      %p73 = scmp.eq.s32.totalorder %s25, 1
      %p74 = por %p72, %p73
      %p76 = scmp.ne.s32.totalorder %s59, %s75
      %p77 = scmp.eq.s32.totalorder %s25, 0
      %p78 = por %p76, %p77
      %s79 = ssub.s32 %s19, %s26
      %p80 = scmp.eq.s32.totalorder %s79, 0
      %s82 = sadd.s32 %s81, 1
      %s83 = scalar_select %p80, %s81, %s82
      %p86 = pneg %p80
      %p87 = scmp.eq.s32.totalorder %s19, 1
      %p88 = por %p86, %p87
      %p89 = scmp.ne.s32.totalorder %s81, %s84
      %p90 = scmp.eq.s32.totalorder %s19, 0
      %p91 = por %p89, %p90
      %p92 = scmp.ne.s32.totalorder %s81, %s84
      %p93 = scmp.eq.s32.totalorder %s24, 1
      %p94 = por %p92, %p93
      %p95 = scmp.ne.s32.totalorder %s84, %s85
      %p96 = scmp.eq.s32.totalorder %s24, 0
      %p97 = por %p95, %p96
      %p98 = scmp.ne.s32.totalorder %s84, %s85
      %p99 = scmp.eq.s32.totalorder %s25, 1
      %p100 = por %p98, %p99
      %p102 = scmp.ne.s32.totalorder %s85, %s101
      %p103 = scmp.eq.s32.totalorder %s25, 0
      %p104 = por %p102, %p103
      %s106 = sadd.s32 %s105, 1
      %p109 = scmp.eq.s32.totalorder %s19, 1
      %p110 = scmp.ne.s32.totalorder %s105, %s107
      %p111 = scmp.eq.s32.totalorder %s19, 0
      %p112 = por %p110, %p111
      %p113 = scmp.ne.s32.totalorder %s105, %s107
      %p114 = scmp.eq.s32.totalorder %s24, 1
      %p115 = por %p113, %p114
      %p116 = scmp.ne.s32.totalorder %s107, %s108
      %p117 = scmp.eq.s32.totalorder %s24, 0
      %p118 = por %p116, %p117
      %p119 = scmp.ne.s32.totalorder %s107, %s108
      %p120 = scmp.eq.s32.totalorder %s25, 1
      %p121 = por %p119, %p120
      %p123 = scmp.ne.s32.totalorder %s108, %s122
      %p124 = scmp.eq.s32.totalorder %s25, 0
      %p125 = por %p123, %p124
      %s127 = sadd.s32 %s126, 1
      %p130 = scmp.eq.s32.totalorder %s19, 1
      %p131 = scmp.ne.s32.totalorder %s126, %s128
      %p132 = scmp.eq.s32.totalorder %s19, 0
      %p133 = por %p131, %p132
      %p134 = scmp.ne.s32.totalorder %s126, %s128
      %p135 = scmp.eq.s32.totalorder %s24, 1
      %p136 = por %p134, %p135
      %p137 = scmp.ne.s32.totalorder %s128, %s129
      %p138 = scmp.eq.s32.totalorder %s24, 0
      %p139 = por %p137, %p138
      %p140 = scmp.ne.s32.totalorder %s128, %s129
      %p141 = scmp.eq.s32.totalorder %s25, 1
      %p142 = por %p140, %p141
      %p144 = scmp.ne.s32.totalorder %s129, %s143
      %p145 = scmp.eq.s32.totalorder %s25, 0
      %p146 = por %p144, %p145
      %s148 = sadd.s32 %s147, 1
      %p151 = scmp.eq.s32.totalorder %s19, 1
      %p152 = scmp.ne.s32.totalorder %s147, %s149
      %p153 = scmp.eq.s32.totalorder %s19, 0
      %p154 = por %p152, %p153
      %p155 = scmp.ne.s32.totalorder %s147, %s149
      %p156 = scmp.eq.s32.totalorder %s24, 1
      %p157 = por %p155, %p156
      %p158 = scmp.ne.s32.totalorder %s149, %s150
      %p159 = scmp.eq.s32.totalorder %s24, 0
      %p160 = por %p158, %p159
      %p161 = scmp.ne.s32.totalorder %s149, %s150
      %p162 = scmp.eq.s32.totalorder %s25, 1
      %p163 = por %p161, %p162
      %p165 = scmp.ne.s32.totalorder %s150, %s164
      %p166 = scmp.eq.s32.totalorder %s25, 0
      %p167 = por %p165, %p166
      %s169 = sadd.s32 %s168, 1
      %p172 = scmp.eq.s32.totalorder %s19, 1
      %p173 = scmp.ne.s32.totalorder %s168, %s170
      %p174 = scmp.eq.s32.totalorder %s19, 0
      %p175 = por %p173, %p174
      %p176 = scmp.ne.s32.totalorder %s168, %s170
      %p177 = scmp.eq.s32.totalorder %s24, 1
      %p178 = por %p176, %p177
      %p179 = scmp.ne.s32.totalorder %s170, %s171
      %p180 = scmp.eq.s32.totalorder %s24, 0
      %p181 = por %p179, %p180
      %p182 = scmp.ne.s32.totalorder %s170, %s171
      %p183 = scmp.eq.s32.totalorder %s25, 1
      %p184 = por %p182, %p183
      %p186 = scmp.ne.s32.totalorder %s171, %s185
      %p187 = scmp.eq.s32.totalorder %s25, 0
      %p188 = por %p186, %p187
      %s190 = sadd.s32 %s189, 1
      %p193 = scmp.eq.s32.totalorder %s19, 1
      %p194 = scmp.ne.s32.totalorder %s189, %s191
      %p195 = scmp.eq.s32.totalorder %s19, 0
      %p196 = por %p194, %p195
      %p197 = scmp.ne.s32.totalorder %s189, %s191
      %p198 = scmp.eq.s32.totalorder %s24, 1
      %p199 = por %p197, %p198
      %p200 = scmp.ne.s32.totalorder %s191, %s192
      %p201 = scmp.eq.s32.totalorder %s24, 0
      %p202 = por %p200, %p201
      %p203 = scmp.ne.s32.totalorder %s191, %s192
      %p204 = scmp.eq.s32.totalorder %s25, 1
      %p205 = por %p203, %p204
      %p207 = scmp.ne.s32.totalorder %s192, %s206
      %p208 = scmp.eq.s32.totalorder %s25, 0
      %p209 = por %p207, %p208
      %s211 = sadd.s32 %s210, 1
      %p214 = scmp.eq.s32.totalorder %s19, 1
      %p215 = scmp.ne.s32.totalorder %s210, %s212
      %p216 = scmp.eq.s32.totalorder %s19, 0
      %p217 = por %p215, %p216
      %p218 = scmp.ne.s32.totalorder %s210, %s212
      %p219 = scmp.eq.s32.totalorder %s24, 1
      %p220 = por %p218, %p219
      %p221 = scmp.ne.s32.totalorder %s212, %s213
      %p222 = scmp.eq.s32.totalorder %s24, 0
      %p223 = por %p221, %p222
      %p224 = scmp.ne.s32.totalorder %s212, %s213
      %p225 = scmp.eq.s32.totalorder %s25, 1
      %p226 = por %p224, %p225
      %p228 = scmp.ne.s32.totalorder %s213, %s227
      %p229 = scmp.eq.s32.totalorder %s25, 0
      %p230 = por %p228, %p229
      %s232 = sadd.s32 %s231, 1
      %p235 = scmp.eq.s32.totalorder %s19, 1
      %p236 = scmp.ne.s32.totalorder %s231, %s233
      %p237 = scmp.eq.s32.totalorder %s19, 0
      %p238 = por %p236, %p237
      %p239 = scmp.ne.s32.totalorder %s231, %s233
      %p240 = scmp.eq.s32.totalorder %s24, 1
      %p241 = por %p239, %p240
      %p242 = scmp.ne.s32.totalorder %s233, %s234
      %p243 = scmp.eq.s32.totalorder %s24, 0
      %p244 = por %p242, %p243
      %p245 = scmp.ne.s32.totalorder %s233, %s234
      %p246 = scmp.eq.s32.totalorder %s25, 1
      %p247 = por %p245, %p246
      %p249 = scmp.ne.s32.totalorder %s234, %s248
      %p250 = scmp.eq.s32.totalorder %s25, 0
      %p251 = por %p249, %p250
      %s252 = ssub.s32 %s19, %s26
      %p253 = scmp.eq.s32.totalorder %s252, 0
      %s255 = sadd.s32 %s254, 1
      %s256 = scalar_select %p253, %s254, %s255
      %p259 = pneg %p253
      %p260 = scmp.eq.s32.totalorder %s19, 1
      %p261 = por %p259, %p260
      %p262 = scmp.ne.s32.totalorder %s254, %s257
      %p263 = scmp.eq.s32.totalorder %s19, 0
      %p264 = por %p262, %p263
      %p265 = scmp.ne.s32.totalorder %s254, %s257
      %p266 = scmp.eq.s32.totalorder %s24, 1
      %p267 = por %p265, %p266
      %p268 = scmp.ne.s32.totalorder %s257, %s258
      %p269 = scmp.eq.s32.totalorder %s24, 0
      %p270 = por %p268, %p269
      %p271 = scmp.ne.s32.totalorder %s257, %s258
      %p272 = scmp.eq.s32.totalorder %s25, 1
      %p273 = por %p271, %p272
      %p275 = scmp.ne.s32.totalorder %s258, %s274
      %p276 = scmp.eq.s32.totalorder %s25, 0
      %p277 = por %p275, %p276
      %p278 = scmp.le.s32.totalorder 1, %s19
      %p279 = scmp.lt.s32.totalorder %s19, 3
      %p280 = pnand %p278, %p279
      %p281 = pneg %p280
      // Predicated region
      $region9: #{tpu_custom_call.1} parent=5 // pred_check
        _
      $region10: #{tpu_custom_call.1} parent=5 // pred_check_branch
        %283 = sbr.rel (%p280) target = $region12
      $region11: #{tpu_custom_call.1} parent=5 // pred_region
        %s284 = ssub.s32 %s19, 1
        // Predicated region
        $region13: #{tpu_custom_call.1} parent=11 // pred_check
          %p285 = pneg %p118
        $region14: #{tpu_custom_call.1} parent=11 // pred_check_branch
          %287 = sbr.rel (%p285) target = $region16
        $region15: #{tpu_custom_call.1} parent=11 // pred_region
          _
        $region16: #{tpu_custom_call.1} parent=11 // pred_fallthru
          _
        // Predicated region
        $region17: #{tpu_custom_call.1} parent=11 // pred_check
          %p288 = pneg %p139
        $region18: #{tpu_custom_call.1} parent=11 // pred_check_branch
          %290 = sbr.rel (%p288) target = $region20
        $region19: #{tpu_custom_call.1} parent=11 // pred_region
          _
        $region20: #{tpu_custom_call.1} parent=11 // pred_fallthru
          _
        // Predicated region
        $region21: #{tpu_custom_call.1} parent=11 // pred_check
          %p291 = pneg %p160
        $region22: #{tpu_custom_call.1} parent=11 // pred_check_branch
          %293 = sbr.rel (%p291) target = $region24
        $region23: #{tpu_custom_call.1} parent=11 // pred_region
          _
        $region24: #{tpu_custom_call.1} parent=11 // pred_fallthru
          _
        // Predicated region
        $region25: #{tpu_custom_call.1} parent=11 // pred_check
          %p294 = pneg %p181
        $region26: #{tpu_custom_call.1} parent=11 // pred_check_branch
          %296 = sbr.rel (%p294) target = $region28
        $region27: #{tpu_custom_call.1} parent=11 // pred_region
          _
        $region28: #{tpu_custom_call.1} parent=11 // pred_fallthru
          _
        // Predicated region
        $region29: #{tpu_custom_call.1} parent=11 // pred_check
          %p297 = pneg %p202
        $region30: #{tpu_custom_call.1} parent=11 // pred_check_branch
          %299 = sbr.rel (%p297) target = $region32
        $region31: #{tpu_custom_call.1} parent=11 // pred_region
          _
        $region32: #{tpu_custom_call.1} parent=11 // pred_fallthru
          _
        // Predicated region
        $region33: #{tpu_custom_call.1} parent=11 // pred_check
          %p300 = pneg %p223
        $region34: #{tpu_custom_call.1} parent=11 // pred_check_branch
          %302 = sbr.rel (%p300) target = $region36
        $region35: #{tpu_custom_call.1} parent=11 // pred_region
          _
        $region36: #{tpu_custom_call.1} parent=11 // pred_fallthru
          _
        // Predicated region
        $region37: #{tpu_custom_call.1} parent=11 // pred_check
          %p303 = pneg %p244
        $region38: #{tpu_custom_call.1} parent=11 // pred_check_branch
          %305 = sbr.rel (%p303) target = $region40
        $region39: #{tpu_custom_call.1} parent=11 // pred_region
          _
        $region40: #{tpu_custom_call.1} parent=11 // pred_fallthru
          _
      $region12: #{tpu_custom_call.1} parent=5 // pred_fallthru
        _
      %p306 = scmp.lt.s32.totalorder %s19, 2
      // Predicated region
      $region41: #{tpu_custom_call.1} parent=5 // pred_check
        %p307 = pneg %p306
      $region42: #{tpu_custom_call.1} parent=5 // pred_check_branch
        %309 = sbr.rel (%p307) target = $region44
      $region43: #{tpu_custom_call.1} parent=5 // pred_region
        // Predicated region
        $region45: #{tpu_custom_call.1} parent=43 // pred_check
          %p310 = pneg %p39
        $region46: #{tpu_custom_call.1} parent=43 // pred_check_branch
          %312 = sbr.rel (%p310) target = $region48
        $region47: #{tpu_custom_call.1} parent=43 // pred_region
          %p313 = scmp.lt.s32.totalorder %s19, 1
          %s314 = scalar_select %p313, %s19, 1
          %s315 = smul.addr %s314, 2
          %s316 = smul.addr %s315, 8
          %s317 = scalar_lea.vmem %s0, %s316
        $region48: #{tpu_custom_call.1} parent=43 // pred_fallthru
          _
        // Predicated region
        $region49: #{tpu_custom_call.1} parent=43 // pred_check
          %p318 = pneg %p65
        $region50: #{tpu_custom_call.1} parent=43 // pred_check_branch
          %320 = sbr.rel (%p318) target = $region52
        $region51: #{tpu_custom_call.1} parent=43 // pred_region
          %p321 = scmp.lt.s32.totalorder %s19, 1
          %s322 = scalar_select %p321, %s19, 1
          %s323 = smul.addr %s322, 2
          %s324 = smul.addr %s323, 8
          %s325 = scalar_lea.vmem %s1, %s324
        $region52: #{tpu_custom_call.1} parent=43 // pred_fallthru
          _
        // Predicated region
        $region53: #{tpu_custom_call.1} parent=43 // pred_check
          %p326 = pneg %p91
        $region54: #{tpu_custom_call.1} parent=43 // pred_check_branch
          %328 = sbr.rel (%p326) target = $region56
        $region55: #{tpu_custom_call.1} parent=43 // pred_region
          %p329 = scmp.lt.s32.totalorder %s19, 1
          %s330 = scalar_select %p329, %s19, 1
          %s331 = smul.addr %s330, 2
          %s332 = smul.addr %s331, 8
          %s333 = scalar_lea.vmem %s2, %s332
        $region56: #{tpu_custom_call.1} parent=43 // pred_fallthru
          _
      $region44: #{tpu_custom_call.1} parent=5 // pred_fallthru
        _
      %p334 = scmp.le.s32.totalorder 1, %s19
      %p335 = scmp.lt.s32.totalorder %s19, 3
      %p336 = pnand %p334, %p335
      %p337 = pneg %p336
      // Predicated region
      $region57: #{tpu_custom_call.1} parent=5 // pred_check
        _
      $region58: #{tpu_custom_call.1} parent=5 // pred_check_branch
        %339 = sbr.rel (%p336) target = $region60
      $region59: #{tpu_custom_call.1} parent=5 // pred_region
        %s340 = ssub.s32 %s19, 1
        %p341 = scmp.lt.s32.totalorder %s24, 1
        %s342 = scalar_select %p341, %s24, 1
        %s343 = smul.addr %s342, 2
        %s344 = smul.addr %s343, 8
        %s345 = scalar_lea.vmem %s0, %s344
        %p346 = pneg %p45
        %p347 = pneg %p42
        %p348 = scmp.lt.s32.totalorder %s24, 1
        %s349 = scalar_select %p348, %s24, 1
        %s350 = smul.addr %s349, 2
        %s351 = smul.addr %s350, 8
        %s352 = scalar_lea.vmem %s1, %s351
        %p353 = pneg %p71
        %p354 = pneg %p68
        %p355 = scmp.lt.s32.totalorder %s24, 1
        %s356 = scalar_select %p355, %s24, 1
        %s357 = smul.addr %s356, 2
        %s358 = smul.addr %s357, 8
        %s359 = scalar_lea.vmem %s2, %s358
        %p360 = pneg %p97
        %p361 = pneg %p94
        %p362 = pneg %p118
        %p363 = pneg %p115
        %p364 = pneg %p139
        %p365 = pneg %p136
        %p366 = pneg %p160
        %p367 = pneg %p157
        %p368 = pneg %p181
        %p369 = pneg %p178
        %p370 = pneg %p202
        %p371 = pneg %p199
        %p372 = pneg %p223
        %p373 = pneg %p220
        %p374 = pneg %p244
        %p375 = pneg %p241
        %p376 = pneg %p270
        %p377 = pneg %p267
        %s378 = sand.u32 %s257, 1
        %s379 = scalar_lea.sflag [#allocation3], %s378
        %s380 = sand.u32 %s257, 1
        %s381 = smul.addr %s380, 16
        %s382 = scalar_lea.vmem [#allocation2], %s381
        %p383 = scmp.lt.s32.totalorder %s24, 1
        %s384 = scalar_select %p383, %s24, 1
        %s385 = smul.addr %s384, 2
        %s386 = smul.addr %s385, 8
        %s387 = scalar_lea.vmem %s0, %s386
        %p388 = scmp.lt.s32.totalorder %s24, 1
        %s389 = scalar_select %p388, %s24, 1
        %s390 = smul.addr %s389, 2
        %s391 = smul.addr %s390, 8
        %s392 = scalar_lea.vmem %s1, %s391
        %p393 = scmp.lt.s32.totalorder %s24, 1
        %s394 = scalar_select %p393, %s24, 1
        %s395 = smul.addr %s394, 2
        %s396 = smul.addr %s395, 8
        %s397 = scalar_lea.vmem %s2, %s396
        %v398 = vld [vmem:[%s392] sm:$0xff]
        %v399 = vld [vmem:[%s392 + $0x8] sm:$0xff]
        %v400 = vld [vmem:[%s397] sm:$0xff]
        %v401 = vld [vmem:[%s397 + $0x8] sm:$0xff]
        %v402 = vld [vmem:[%s387] sm:$0xff]
        %v403 = vld [vmem:[%s387 + $0x8] sm:$0xff]
        %v404 = vlaneseq
        %v405 = vshrl.u32 %v404, 7
        %v406 = vadd.s32 %v405, 8
        %v407 = vlaneseq
        %v408 = vand.u32 %v407, 127
        %vm409 = vcmp.eq.s32.totalorder %v405, %v408
        %vm410 = vcmp.eq.s32.totalorder %v406, %v408
        %v411 = vsel %vm409, 1.0, %v398
        %v412 = vsel %vm410, 1.0, %v399
        %vm413 = vcmask 130048
        %v414 = vsel %vm413, %v411, 0.0
        %415 = vadd.xlane.f32.xlu0 %v414
        %v416 = vpop.xlane.xlu0 %415
        %v417 = vsel %vm413, %v412, 0.0
        %418 = vadd.xlane.f32.xlu0 %v417
        %v419 = vpop.xlane.xlu0 %418
        %v420 = vmax.f32 %v416, 1.0
        %v421 = vmax.f32 %v419, 1.0
        %v422 = vrsqrt.pop %v420
        %v423 = vrsqrt.pop %v421
        %v424 = vld [vmem:[%s3] sm:$0xf]
        %v425 = vld [vmem:[%s4] sm:$0x1]
        %vm426 = vcmask 31744
        %v428 = vsel %vm426, %v402, 0
        %v431 = vsel %vm426, %v403, 0
        %vm433 = vcmask 1043456
        %v435 = vsel %vm433, %v424, 0
        %437 = vmatprep.subr.mxu0 0.0
        %438 = vmatpush1.msra.mxu0 %v435
        %439 = vmatprep.subr.mxu0 0.0
        %440 = vmatpush1.msra.mxu0 0.0
        %441 = vmatprep.subr.mxu0 0.0
        %442 = vmatpush1.msra.mxu0 0.0
        %443 = vmatprep.subr.mxu0 0.0
        %444 = vmatpush1.msra.mxu0 0.0
        %445 = vmatprep.subr.mxu0 0.0
        %446 = vmatpush1.msra.mxu0 0.0
        %447 = vmatprep.subr.mxu0 0.0
        %448 = vmatpush1.msra.mxu0 0.0
        %449 = vmatprep.subr.mxu0 0.0
        %450 = vmatpush1.msra.mxu0 0.0
        %451 = vmatprep.subr.mxu0 0.0
        %452 = vmatpush1.msra.mxu0 0.0
        %453 = vmatprep.subr.mxu0 0.0
        %454 = vmatpush1.msra.mxu0 0.0
        %455 = vmatprep.subr.mxu0 0.0
        %456 = vmatpush1.msra.mxu0 0.0
        %457 = vmatprep.subr.mxu0 0.0
        %458 = vmatpush1.msra.mxu0 0.0
        %459 = vmatprep.subr.mxu0 0.0
        %460 = vmatpush1.msra.mxu0 0.0
        %461 = vmatprep.subr.mxu0 0.0
        %462 = vmatpush1.msra.mxu0 0.0
        %463 = vmatprep.subr.mxu0 0.0
        %464 = vmatpush1.msra.mxu0 0.0
        %465 = vmatprep.subr.mxu0 0.0
        %466 = vmatpush1.msra.mxu0 0.0
        %467 = vmatprep.subr.mxu0 0.0
        %468 = vmatpush1.msra.mxu0 0.0
        %469 = vmatprep.subr.mxu0 0.0
        %470 = vmatpush1.msra.mxu0 0.0
        %471 = vmatprep.subr.mxu0 0.0
        %472 = vmatpush1.msra.mxu0 0.0
        %473 = vmatprep.subr.mxu0 0.0
        %474 = vmatpush1.msra.mxu0 0.0
        %475 = vmatprep.subr.mxu0 0.0
        %476 = vmatpush1.msra.mxu0 0.0
        %477 = vmatprep.subr.mxu0 0.0
        %478 = vmatpush1.msra.mxu0 0.0
        %479 = vmatprep.subr.mxu0 0.0
        %480 = vmatpush1.msra.mxu0 0.0
        %481 = vmatprep.subr.mxu0 0.0
        %482 = vmatpush1.msra.mxu0 0.0
        %483 = vmatprep.subr.mxu0 0.0
        %484 = vmatpush1.msra.mxu0 0.0
        %485 = vmatprep.subr.mxu0 0.0
        %486 = vmatpush1.msra.mxu0 0.0
        %487 = vmatprep.subr.mxu0 0.0
        %488 = vmatpush1.msra.mxu0 0.0
        %489 = vmatprep.subr.mxu0 0.0
        %490 = vmatpush1.msra.mxu0 0.0
        %491 = vmatprep.subr.mxu0 0.0
        %492 = vmatpush1.msra.mxu0 0.0
        %493 = vmatprep.subr.mxu0 0.0
        %494 = vmatpush1.msra.mxu0 0.0
        %495 = vmatprep.subr.mxu0 0.0
        %496 = vmatpush1.msra.mxu0 0.0
        %497 = vmatprep.subr.mxu0 0.0
        %498 = vmatpush1.msra.mxu0 0.0
        %499 = vmatprep.subr.mxu0 0.0
        %500 = vmatpush1.msra.mxu0 0.0
        %501 = vmatprep.mubr.f32.mxu0 0.0
        %502 = vmatmul.mubr.f32.gmra.mrb[0].mxu0 %v428
        %v503 = vpop.f32.mrb[0].mxu0
        %v504 = vadd.f32 0.0, %v503
        %v505 = vpop.f32.mrb[0].mxu0
        %506 = vmatprep.mubr.f32.mxu0 0.0
        %507 = vmatmul.mubr.f32.gmra.mrb[0].mxu0 %v431
        %v508 = vpop.f32.mrb[0].mxu0
        %v509 = vadd.f32 0.0, %v508
        %v510 = vpop.f32.mrb[0].mxu0
        %511 = vdwg.mxu0
        %v512 = vmul.f32 %v422, %v504
        %v513 = vmul.f32 %v423, %v509
        %v515 = vsel %vm413, %v411, 0
        %v518 = vsel %vm413, %v412, 0
        %520 = vmatprep.subr.mxu0 0.0
        %521 = vmatpush1.msra.mxu0 %v512
        %522 = vmatprep.subr.mxu0 0.0
        %523 = vmatpush1.msra.mxu0 %v513
        %524 = vmatprep.subr.mxu0 0.0
        %525 = vmatpush1.msra.mxu0 0.0
        %526 = vmatprep.subr.mxu0 0.0
        %527 = vmatpush1.msra.mxu0 0.0
        %528 = vmatprep.subr.mxu0 0.0
        %529 = vmatpush1.msra.mxu0 0.0
        %530 = vmatprep.subr.mxu0 0.0
        %531 = vmatpush1.msra.mxu0 0.0
        %532 = vmatprep.subr.mxu0 0.0
        %533 = vmatpush1.msra.mxu0 0.0
        %534 = vmatprep.subr.mxu0 0.0
        %535 = vmatpush1.msra.mxu0 0.0
        %536 = vmatprep.subr.mxu0 0.0
        %537 = vmatpush1.msra.mxu0 0.0
        %538 = vmatprep.subr.mxu0 0.0
        %539 = vmatpush1.msra.mxu0 0.0
        %540 = vmatprep.subr.mxu0 0.0
        %541 = vmatpush1.msra.mxu0 0.0
        %542 = vmatprep.subr.mxu0 0.0
        %543 = vmatpush1.msra.mxu0 0.0
        %544 = vmatprep.subr.mxu0 0.0
        %545 = vmatpush1.msra.mxu0 0.0
        %546 = vmatprep.subr.mxu0 0.0
        %547 = vmatpush1.msra.mxu0 0.0
        %548 = vmatprep.subr.mxu0 0.0
        %549 = vmatpush1.msra.mxu0 0.0
        %550 = vmatprep.subr.mxu0 0.0
        %551 = vmatpush1.msra.mxu0 0.0
        %552 = vmatprep.subr.mxu0 0.0
        %553 = vmatpush1.msra.mxu0 0.0
        %554 = vmatprep.subr.mxu0 0.0
        %555 = vmatpush1.msra.mxu0 0.0
        %556 = vmatprep.subr.mxu0 0.0
        %557 = vmatpush1.msra.mxu0 0.0
        %558 = vmatprep.subr.mxu0 0.0
        %559 = vmatpush1.msra.mxu0 0.0
        %560 = vmatprep.subr.mxu0 0.0
        %561 = vmatpush1.msra.mxu0 0.0
        %562 = vmatprep.subr.mxu0 0.0
        %563 = vmatpush1.msra.mxu0 0.0
        %564 = vmatprep.subr.mxu0 0.0
        %565 = vmatpush1.msra.mxu0 0.0
        %566 = vmatprep.subr.mxu0 0.0
        %567 = vmatpush1.msra.mxu0 0.0
        %568 = vmatprep.subr.mxu0 0.0
        %569 = vmatpush1.msra.mxu0 0.0
        %570 = vmatprep.subr.mxu0 0.0
        %571 = vmatpush1.msra.mxu0 0.0
        %572 = vmatprep.subr.mxu0 0.0
        %573 = vmatpush1.msra.mxu0 0.0
        %574 = vmatprep.subr.mxu0 0.0
        %575 = vmatpush1.msra.mxu0 0.0
        %576 = vmatprep.subr.mxu0 0.0
        %577 = vmatpush1.msra.mxu0 0.0
        %578 = vmatprep.subr.mxu0 0.0
        %579 = vmatpush1.msra.mxu0 0.0
        %580 = vmatprep.subr.mxu0 0.0
        %581 = vmatpush1.msra.mxu0 0.0
        %582 = vmatprep.subr.mxu0 0.0
        %583 = vmatpush1.msra.mxu0 0.0
        %584 = vmatprep.mubr.f32.mxu0 0.0
        %585 = vmatmul.mubr.f32.gmra.mrb[0].mxu0 %v515
        %v586 = vpop.f32.mrb[0].mxu0
        %v587 = vadd.f32 0.0, %v586
        %v588 = vpop.f32.mrb[0].mxu0
        %589 = vmatprep.mubr.f32.mxu0 0.0
        %590 = vmatmul.mubr.f32.gmra.mrb[0].mxu0 %v518
        %v591 = vpop.f32.mrb[0].mxu0
        %v592 = vadd.f32 0.0, %v591
        %v593 = vpop.f32.mrb[0].mxu0
        %594 = vdwg.mxu0
        %v595 = vmul.f32 %v422, %v587
        %v596 = vmul.f32 %v423, %v592
        %v598 = vlaneseq
        %v599 = vshrl.u32 %v598, 7
        %v600 = vsub.s32 0, %v599
        %v601 = vrot.slane %v425, %v600
        %v603 = vadd.f32 %v595, %v601
        %v604 = vadd.f32 %v596, %v601
        %606 = vset.pattern.permute.xlu0 0
        %607 = vperm.xlu0 %606, %v400
        %v608 = vpop.permute.xlu0 %607
        %611 = vset.pattern.permute.xlu0 0
        %612 = vperm.xlu0 %611, %v401
        %v613 = vpop.permute.xlu0 %612
        %v615 = vmul.f32 %v603, %v608
        %v616 = vmul.f32 %v604, %v613
        %v617 = vmax.f32 %v615, 0.0
        %v618 = vmax.f32 %v616, 0.0
        %v619 = vld [vmem:[%s5] sm:$0xff]
        %v620 = vld [vmem:[%s6] sm:$0x1]
        %vm621 = vcmask 64512
        %v623 = vsel %vm621, %v617, 0
        %v626 = vsel %vm621, %v618, 0
        %628 = vmatprep.subr.mxu0 0.0
        %629 = vmatpush1.msra.mxu0 %v619
        %630 = vmatprep.subr.mxu0 0.0
        %631 = vmatpush1.msra.mxu0 0.0
        %632 = vmatprep.subr.mxu0 0.0
        %633 = vmatpush1.msra.mxu0 0.0
        %634 = vmatprep.subr.mxu0 0.0
        %635 = vmatpush1.msra.mxu0 0.0
        %636 = vmatprep.subr.mxu0 0.0
        %637 = vmatpush1.msra.mxu0 0.0
        %638 = vmatprep.subr.mxu0 0.0
        %639 = vmatpush1.msra.mxu0 0.0
        %640 = vmatprep.subr.mxu0 0.0
        %641 = vmatpush1.msra.mxu0 0.0
        %642 = vmatprep.subr.mxu0 0.0
        %643 = vmatpush1.msra.mxu0 0.0
        %644 = vmatprep.subr.mxu0 0.0
        %645 = vmatpush1.msra.mxu0 0.0
        %646 = vmatprep.subr.mxu0 0.0
        %647 = vmatpush1.msra.mxu0 0.0
        %648 = vmatprep.subr.mxu0 0.0
        %649 = vmatpush1.msra.mxu0 0.0
        %650 = vmatprep.subr.mxu0 0.0
        %651 = vmatpush1.msra.mxu0 0.0
        %652 = vmatprep.subr.mxu0 0.0
        %653 = vmatpush1.msra.mxu0 0.0
        %654 = vmatprep.subr.mxu0 0.0
        %655 = vmatpush1.msra.mxu0 0.0
        %656 = vmatprep.subr.mxu0 0.0
        %657 = vmatpush1.msra.mxu0 0.0
        %658 = vmatprep.subr.mxu0 0.0
        %659 = vmatpush1.msra.mxu0 0.0
        %660 = vmatprep.subr.mxu0 0.0
        %661 = vmatpush1.msra.mxu0 0.0
        %662 = vmatprep.subr.mxu0 0.0
        %663 = vmatpush1.msra.mxu0 0.0
        %664 = vmatprep.subr.mxu0 0.0
        %665 = vmatpush1.msra.mxu0 0.0
        %666 = vmatprep.subr.mxu0 0.0
        %667 = vmatpush1.msra.mxu0 0.0
        %668 = vmatprep.subr.mxu0 0.0
        %669 = vmatpush1.msra.mxu0 0.0
        %670 = vmatprep.subr.mxu0 0.0
        %671 = vmatpush1.msra.mxu0 0.0
        %672 = vmatprep.subr.mxu0 0.0
        %673 = vmatpush1.msra.mxu0 0.0
        %674 = vmatprep.subr.mxu0 0.0
        %675 = vmatpush1.msra.mxu0 0.0
        %676 = vmatprep.subr.mxu0 0.0
        %677 = vmatpush1.msra.mxu0 0.0
        %678 = vmatprep.subr.mxu0 0.0
        %679 = vmatpush1.msra.mxu0 0.0
        %680 = vmatprep.subr.mxu0 0.0
        %681 = vmatpush1.msra.mxu0 0.0
        %682 = vmatprep.subr.mxu0 0.0
        %683 = vmatpush1.msra.mxu0 0.0
        %684 = vmatprep.subr.mxu0 0.0
        %685 = vmatpush1.msra.mxu0 0.0
        %686 = vmatprep.subr.mxu0 0.0
        %687 = vmatpush1.msra.mxu0 0.0
        %688 = vmatprep.subr.mxu0 0.0
        %689 = vmatpush1.msra.mxu0 0.0
        %690 = vmatprep.subr.mxu0 0.0
        %691 = vmatpush1.msra.mxu0 0.0
        %692 = vmatprep.mubr.f32.mxu0 0.0
        %693 = vmatmul.mubr.f32.gmra.mrb[0].mxu0 %v623
        %v694 = vpop.f32.mrb[0].mxu0
        %v695 = vadd.f32 0.0, %v694
        %v696 = vpop.f32.mrb[0].mxu0
        %697 = vmatprep.mubr.f32.mxu0 0.0
        %698 = vmatmul.mubr.f32.gmra.mrb[0].mxu0 %v626
        %v699 = vpop.f32.mrb[0].mxu0
        %v700 = vadd.f32 0.0, %v699
        %v701 = vpop.f32.mrb[0].mxu0
        %702 = vdwg.mxu0
        %v703 = vmul.f32 %v422, %v695
        %v704 = vmul.f32 %v423, %v700
        %705 = vmatprep.subr.mxu0 0.0
        %706 = vmatpush1.msra.mxu0 %v703
        %707 = vmatprep.subr.mxu0 0.0
        %708 = vmatpush1.msra.mxu0 %v704
        %709 = vmatprep.subr.mxu0 0.0
        %710 = vmatpush1.msra.mxu0 0.0
        %711 = vmatprep.subr.mxu0 0.0
        %712 = vmatpush1.msra.mxu0 0.0
        %713 = vmatprep.subr.mxu0 0.0
        %714 = vmatpush1.msra.mxu0 0.0
        %715 = vmatprep.subr.mxu0 0.0
        %716 = vmatpush1.msra.mxu0 0.0
        %717 = vmatprep.subr.mxu0 0.0
        %718 = vmatpush1.msra.mxu0 0.0
        %719 = vmatprep.subr.mxu0 0.0
        %720 = vmatpush1.msra.mxu0 0.0
        %721 = vmatprep.subr.mxu0 0.0
        %722 = vmatpush1.msra.mxu0 0.0
        %723 = vmatprep.subr.mxu0 0.0
        %724 = vmatpush1.msra.mxu0 0.0
        %725 = vmatprep.subr.mxu0 0.0
        %726 = vmatpush1.msra.mxu0 0.0
        %727 = vmatprep.subr.mxu0 0.0
        %728 = vmatpush1.msra.mxu0 0.0
        %729 = vmatprep.subr.mxu0 0.0
        %730 = vmatpush1.msra.mxu0 0.0
        %731 = vmatprep.subr.mxu0 0.0
        %732 = vmatpush1.msra.mxu0 0.0
        %733 = vmatprep.subr.mxu0 0.0
        %734 = vmatpush1.msra.mxu0 0.0
        %735 = vmatprep.subr.mxu0 0.0
        %736 = vmatpush1.msra.mxu0 0.0
        %737 = vmatprep.subr.mxu0 0.0
        %738 = vmatpush1.msra.mxu0 0.0
        %739 = vmatprep.subr.mxu0 0.0
        %740 = vmatpush1.msra.mxu0 0.0
        %741 = vmatprep.subr.mxu0 0.0
        %742 = vmatpush1.msra.mxu0 0.0
        %743 = vmatprep.subr.mxu0 0.0
        %744 = vmatpush1.msra.mxu0 0.0
        %745 = vmatprep.subr.mxu0 0.0
        %746 = vmatpush1.msra.mxu0 0.0
        %747 = vmatprep.subr.mxu0 0.0
        %748 = vmatpush1.msra.mxu0 0.0
        %749 = vmatprep.subr.mxu0 0.0
        %750 = vmatpush1.msra.mxu0 0.0
        %751 = vmatprep.subr.mxu0 0.0
        %752 = vmatpush1.msra.mxu0 0.0
        %753 = vmatprep.subr.mxu0 0.0
        %754 = vmatpush1.msra.mxu0 0.0
        %755 = vmatprep.subr.mxu0 0.0
        %756 = vmatpush1.msra.mxu0 0.0
        %757 = vmatprep.subr.mxu0 0.0
        %758 = vmatpush1.msra.mxu0 0.0
        %759 = vmatprep.subr.mxu0 0.0
        %760 = vmatpush1.msra.mxu0 0.0
        %761 = vmatprep.subr.mxu0 0.0
        %762 = vmatpush1.msra.mxu0 0.0
        %763 = vmatprep.subr.mxu0 0.0
        %764 = vmatpush1.msra.mxu0 0.0
        %765 = vmatprep.subr.mxu0 0.0
        %766 = vmatpush1.msra.mxu0 0.0
        %767 = vmatprep.subr.mxu0 0.0
        %768 = vmatpush1.msra.mxu0 0.0
        %769 = vmatprep.mubr.f32.mxu0 0.0
        %770 = vmatmul.mubr.f32.gmra.mrb[0].mxu0 %v515
        %v771 = vpop.f32.mrb[0].mxu0
        %v772 = vadd.f32 0.0, %v771
        %v773 = vpop.f32.mrb[0].mxu0
        %774 = vmatprep.mubr.f32.mxu0 0.0
        %775 = vmatmul.mubr.f32.gmra.mrb[0].mxu0 %v518
        %v776 = vpop.f32.mrb[0].mxu0
        %v777 = vadd.f32 0.0, %v776
        %v778 = vpop.f32.mrb[0].mxu0
        %779 = vdwg.mxu0
        %v780 = vmul.f32 %v422, %v772
        %v781 = vmul.f32 %v423, %v777
        %v783 = vlaneseq
        %v784 = vshrl.u32 %v783, 7
        %v785 = vsub.s32 0, %v784
        %v786 = vrot.slane %v620, %v785
        %v788 = vadd.f32 %v780, %v786
        %v789 = vadd.f32 %v781, %v786
        %v790 = vmul.f32 %v788, %v608
        %v791 = vmul.f32 %v789, %v613
        %v792 = vmax.f32 %v790, 0.0
        %v793 = vmax.f32 %v791, 0.0
        %v794 = vld [vmem:[%s7] sm:$0xff]
        %v795 = vld [vmem:[%s8] sm:$0xff]
        %v797 = vsel %vm621, %v792, 0
        %v800 = vsel %vm621, %v793, 0
        %802 = vmatprep.subr.mxu0 0.0
        %803 = vmatpush1.msra.mxu0 %v795
        %804 = vmatprep.subr.mxu0 0.0
        %805 = vmatpush1.msra.mxu0 0.0
        %806 = vmatprep.subr.mxu0 0.0
        %807 = vmatpush1.msra.mxu0 0.0
        %808 = vmatprep.subr.mxu0 0.0
        %809 = vmatpush1.msra.mxu0 0.0
        %810 = vmatprep.subr.mxu0 0.0
        %811 = vmatpush1.msra.mxu0 0.0
        %812 = vmatprep.subr.mxu0 0.0
        %813 = vmatpush1.msra.mxu0 0.0
        %814 = vmatprep.subr.mxu0 0.0
        %815 = vmatpush1.msra.mxu0 0.0
        %816 = vmatprep.subr.mxu0 0.0
        %817 = vmatpush1.msra.mxu0 0.0
        %818 = vmatprep.subr.mxu0 0.0
        %819 = vmatpush1.msra.mxu0 0.0
        %820 = vmatprep.subr.mxu0 0.0
        %821 = vmatpush1.msra.mxu0 0.0
        %822 = vmatprep.subr.mxu0 0.0
        %823 = vmatpush1.msra.mxu0 0.0
        %824 = vmatprep.subr.mxu0 0.0
        %825 = vmatpush1.msra.mxu0 0.0
        %826 = vmatprep.subr.mxu0 0.0
        %827 = vmatpush1.msra.mxu0 0.0
        %828 = vmatprep.subr.mxu0 0.0
        %829 = vmatpush1.msra.mxu0 0.0
        %830 = vmatprep.subr.mxu0 0.0
        %831 = vmatpush1.msra.mxu0 0.0
        %832 = vmatprep.subr.mxu0 0.0
        %833 = vmatpush1.msra.mxu0 0.0
        %834 = vmatprep.subr.mxu0 0.0
        %835 = vmatpush1.msra.mxu0 0.0
        %836 = vmatprep.subr.mxu0 0.0
        %837 = vmatpush1.msra.mxu0 0.0
        %838 = vmatprep.subr.mxu0 0.0
        %839 = vmatpush1.msra.mxu0 0.0
        %840 = vmatprep.subr.mxu0 0.0
        %841 = vmatpush1.msra.mxu0 0.0
        %842 = vmatprep.subr.mxu0 0.0
        %843 = vmatpush1.msra.mxu0 0.0
        %844 = vmatprep.subr.mxu0 0.0
        %845 = vmatpush1.msra.mxu0 0.0
        %846 = vmatprep.subr.mxu0 0.0
        %847 = vmatpush1.msra.mxu0 0.0
        %848 = vmatprep.subr.mxu0 0.0
        %849 = vmatpush1.msra.mxu0 0.0
        %850 = vmatprep.subr.mxu0 0.0
        %851 = vmatpush1.msra.mxu0 0.0
        %852 = vmatprep.subr.mxu0 0.0
        %853 = vmatpush1.msra.mxu0 0.0
        %854 = vmatprep.subr.mxu0 0.0
        %855 = vmatpush1.msra.mxu0 0.0
        %856 = vmatprep.subr.mxu0 0.0
        %857 = vmatpush1.msra.mxu0 0.0
        %858 = vmatprep.subr.mxu0 0.0
        %859 = vmatpush1.msra.mxu0 0.0
        %860 = vmatprep.subr.mxu0 0.0
        %861 = vmatpush1.msra.mxu0 0.0
        %862 = vmatprep.subr.mxu0 0.0
        %863 = vmatpush1.msra.mxu0 0.0
        %864 = vmatprep.subr.mxu0 0.0
        %865 = vmatpush1.msra.mxu0 0.0
        %866 = vmatprep.mubr.f32.mxu0 0.0
        %867 = vmatmul.mubr.f32.gmra.mrb[0].mxu0 %v797
        %v868 = vpop.f32.mrb[0].mxu0
        %v869 = vadd.f32 0.0, %v868
        %v870 = vpop.f32.mrb[0].mxu0
        %871 = vmatprep.mubr.f32.mxu0 0.0
        %872 = vmatmul.mubr.f32.gmra.mrb[0].mxu0 %v800
        %v873 = vpop.f32.mrb[0].mxu0
        %v874 = vadd.f32 0.0, %v873
        %v875 = vpop.f32.mrb[0].mxu0
        %876 = vdwg.mxu0
        %877 = vmatprep.subr.mxu0 0.0
        %878 = vmatpush1.msra.mxu0 %v794
        %879 = vmatprep.subr.mxu0 0.0
        %880 = vmatpush1.msra.mxu0 0.0
        %881 = vmatprep.subr.mxu0 0.0
        %882 = vmatpush1.msra.mxu0 0.0
        %883 = vmatprep.subr.mxu0 0.0
        %884 = vmatpush1.msra.mxu0 0.0
        %885 = vmatprep.subr.mxu0 0.0
        %886 = vmatpush1.msra.mxu0 0.0
        %887 = vmatprep.subr.mxu0 0.0
        %888 = vmatpush1.msra.mxu0 0.0
        %889 = vmatprep.subr.mxu0 0.0
        %890 = vmatpush1.msra.mxu0 0.0
        %891 = vmatprep.subr.mxu0 0.0
        %892 = vmatpush1.msra.mxu0 0.0
        %893 = vmatprep.subr.mxu0 0.0
        %894 = vmatpush1.msra.mxu0 0.0
        %895 = vmatprep.subr.mxu0 0.0
        %896 = vmatpush1.msra.mxu0 0.0
        %897 = vmatprep.subr.mxu0 0.0
        %898 = vmatpush1.msra.mxu0 0.0
        %899 = vmatprep.subr.mxu0 0.0
        %900 = vmatpush1.msra.mxu0 0.0
        %901 = vmatprep.subr.mxu0 0.0
        %902 = vmatpush1.msra.mxu0 0.0
        %903 = vmatprep.subr.mxu0 0.0
        %904 = vmatpush1.msra.mxu0 0.0
        %905 = vmatprep.subr.mxu0 0.0
        %906 = vmatpush1.msra.mxu0 0.0
        %907 = vmatprep.subr.mxu0 0.0
        %908 = vmatpush1.msra.mxu0 0.0
        %909 = vmatprep.subr.mxu0 0.0
        %910 = vmatpush1.msra.mxu0 0.0
        %911 = vmatprep.subr.mxu0 0.0
        %912 = vmatpush1.msra.mxu0 0.0
        %913 = vmatprep.subr.mxu0 0.0
        %914 = vmatpush1.msra.mxu0 0.0
        %915 = vmatprep.subr.mxu0 0.0
        %916 = vmatpush1.msra.mxu0 0.0
        %917 = vmatprep.subr.mxu0 0.0
        %918 = vmatpush1.msra.mxu0 0.0
        %919 = vmatprep.subr.mxu0 0.0
        %920 = vmatpush1.msra.mxu0 0.0
        %921 = vmatprep.subr.mxu0 0.0
        %922 = vmatpush1.msra.mxu0 0.0
        %923 = vmatprep.subr.mxu0 0.0
        %924 = vmatpush1.msra.mxu0 0.0
        %925 = vmatprep.subr.mxu0 0.0
        %926 = vmatpush1.msra.mxu0 0.0
        %927 = vmatprep.subr.mxu0 0.0
        %928 = vmatpush1.msra.mxu0 0.0
        %929 = vmatprep.subr.mxu0 0.0
        %930 = vmatpush1.msra.mxu0 0.0
        %931 = vmatprep.subr.mxu0 0.0
        %932 = vmatpush1.msra.mxu0 0.0
        %933 = vmatprep.subr.mxu0 0.0
        %934 = vmatpush1.msra.mxu0 0.0
        %935 = vmatprep.subr.mxu0 0.0
        %936 = vmatpush1.msra.mxu0 0.0
        %937 = vmatprep.subr.mxu0 0.0
        %938 = vmatpush1.msra.mxu0 0.0
        %939 = vmatprep.subr.mxu0 0.0
        %940 = vmatpush1.msra.mxu0 0.0
        %941 = vmatprep.mubr.f32.mxu0 0.0
        %942 = vmatmul.mubr.f32.gmra.mrb[0].mxu0 %v623
        %v943 = vpop.f32.mrb[0].mxu0
        %v944 = vadd.f32 %v869, %v943
        %v945 = vpop.f32.mrb[0].mxu0
        %946 = vmatprep.mubr.f32.mxu0 0.0
        %947 = vmatmul.mubr.f32.gmra.mrb[0].mxu0 %v626
        %v948 = vpop.f32.mrb[0].mxu0
        %v949 = vadd.f32 %v874, %v948
        %v950 = vpop.f32.mrb[0].mxu0
        %951 = vdwg.mxu0
        %v952 = vld [vmem:[%s9] sm:$0x1]
        %v954 = vlaneseq
        %v955 = vshrl.u32 %v954, 7
        %v956 = vsub.s32 0, %v955
        %v957 = vrot.slane %v952, %v956
        %v959 = vadd.f32 %v944, %v957
        %v960 = vadd.f32 %v949, %v957
        %v961 = vmax.f32 %v959, 0.0
        %v962 = vmax.f32 %v960, 0.0
        %v963 = vmul.f32 %v961, %v608
        %v964 = vmul.f32 %v962, %v613
        %965 = vst [vmem:[%s382] sm:$0xff] %v963
        %966 = vst [vmem:[%s382 + $0x8] sm:$0xff] %v964
        %s967 = sand.u32 %s257, 1
        %s968 = scalar_lea.sflag [#allocation3], %s967
        %s969 = sand.u32 %s257, 1
        %s970 = smul.addr %s969, 16
        %s971 = scalar_lea.vmem [#allocation2], %s970
        // Predicated region
        $region61: #{tpu_custom_call.1} parent=59 // pred_check
          %p972 = pneg %p267
        $region62: #{tpu_custom_call.1} parent=59 // pred_check_branch
          %974 = sbr.rel (%p972) target = $region64
        $region63: #{tpu_custom_call.1} parent=59 // pred_region
          %s976 = ssub.s32 256, 256
          %977 = vsyncadd %s968, %s976
          %s978 = smul.addr %s24, 2
          %s979 = smul.addr %s978, 128
          %s980 = scalar_lea.hbm %s10, %s979
          %s981 = sshll.u32 %s971, 4
          %s982 = int_to_ptr.vmem [resolvable:$true] %s981
          %987 = dma.vmem_to_hbm [thread:$0]  %s982, 256, %s980, %s968, 128, 128, 8
        $region64: #{tpu_custom_call.1} parent=59 // pred_fallthru
          _
      $region60: #{tpu_custom_call.1} parent=5 // pred_fallthru
        _
      %p988 = scmp.le.s32.totalorder 2, %s19
      // Predicated region
      $region65: #{tpu_custom_call.1} parent=5 // pred_check
        %p989 = pneg %p988
      $region66: #{tpu_custom_call.1} parent=5 // pred_check_branch
        %991 = sbr.rel (%p989) target = $region68
      $region67: #{tpu_custom_call.1} parent=5 // pred_region
        %s992 = ssub.s32 %s19, 2
        // Predicated region
        $region69: #{tpu_custom_call.1} parent=67 // pred_check
          %p993 = pneg %p273
        $region70: #{tpu_custom_call.1} parent=67 // pred_check_branch
          %995 = sbr.rel (%p993) target = $region72
        $region71: #{tpu_custom_call.1} parent=67 // pred_region
          %s996 = sand.u32 %s258, 1
          %s997 = scalar_lea.sflag [#allocation3], %s996
          %s998 = sand.u32 %s258, 1
          %s999 = smul.addr %s998, 16
          %s1000 = scalar_lea.vmem [#allocation2], %s999
          %1001 = dma.done %s997, 256
        $region72: #{tpu_custom_call.1} parent=67 // pred_fallthru
          _
      $region68: #{tpu_custom_call.1} parent=5 // pred_fallthru
        _
    $region6: #{tpu_custom_call.1} parent=1 // loop_footer
      %s23 = sadd.s32 1, %s19
    $region7: #{tpu_custom_call.1} parent=1 // loop_footer_branch
      %18 = sbr.rel target = $region3
    $region8: #{tpu_custom_call.1} parent=1 // loop_exit
      _
    %1002 = vsyncpa [#allocation3], 1
    %s1003 = scalar_lea.sflag [#allocation3], 1
    %1004 = vsyncpa %s1003, 1

</llo_original>
